<compile_context>
chip_gen: v7x
topology: tpu7x:2x2x1
jax: 0.10.0
libtpu: 0.0.40
codegen_flags: <defaults>
</compile_context>

<pallas_src>
import functools
import math

import jax
import jax.numpy as jnp
from jax.experimental import pallas as pl
from jax.experimental.pallas import tpu as pltpu


def _round_up(x: int, m: int) -> int:
    return (x + m - 1) // m * m


def _fused_eval_kernel(
    state_ref, action_ref, inv_var_ref,
    w1_ref, b1_ref, w2_ref, b2_ref, w3_ref, b3_ref,
    out_ref,
    *, action_dim: int, matmul_dtype,
):
    """Fused actor+critic forward + diag-MVN Mahalanobis term.

    Output slab layout, lane-dense (TB, 128) f32:
      col 0       : -0.5 * (action - mean)^T diag(1/var) (action - mean)
      col 1       : critic state value
      cols 2..127 : zeros
    """
    x = state_ref[...].astype(matmul_dtype)                               # (TB, S)

    # layer 1: (TB, S) @ (S, 2H) -> [actor hidden | critic hidden]
    h = jnp.tanh(
        jnp.dot(x, w1_ref[...], preferred_element_type=jnp.float32) + b1_ref[...]
    )
    # layer 2: block-diagonal (2H, 2H) keeps the two towers independent
    h = jnp.tanh(
        jnp.dot(h.astype(matmul_dtype), w2_ref[...],
                preferred_element_type=jnp.float32) + b2_ref[...]
    )
    # layer 3: (2H, A+1) -> [action_mean | state_value]
    o = (
        jnp.dot(h.astype(matmul_dtype), w3_ref[...],
                preferred_element_type=jnp.float32) + b3_ref[...]
    )                                                                     # (TB, A+1) f32
    mean = o[:, :action_dim]                                              # (TB, A)
    val = o[:, action_dim:action_dim + 1]                                 # (TB, 1)

    # Mahalanobis term with precomputed exact reciprocal (VPU-only, no div/EUP)
    diff = action_ref[...] - mean                                         # (TB, A)
    maha = jnp.sum(diff * diff * inv_var_ref[...], axis=-1, keepdims=True)
    neg_half_maha = -0.5 * maha                                           # (TB, 1)

    # one unmasked, lane-dense store of the whole (TB, 128) block
    lane = jax.lax.broadcasted_iota(jnp.int32, out_ref.shape, 1)
    out_ref[...] = jnp.where(
        lane == 0, neg_half_maha, jnp.where(lane == 1, val, 0.0)
    ).astype(out_ref.dtype)


def actor_critic_evaluate(state, action, action_var, actor_params, critic_params,
                          *, block_rows: int = 512, matmul_dtype=jnp.float32):
    """Returns (action_logprobs (B,), state_values (B,1), dist_entropy (B,))."""
    B, S = state.shape
    A = action.shape[-1]
    H = actor_params[0].shape[1]

    aw1, ab1, aw2, ab2, aw3, ab3 = actor_params
    cw1, cb1, cw2, cb2, cw3, cb3 = critic_params

    # ---- fuse actor & critic into a single 3-matmul tower (built once per call) ----
    w1 = jnp.concatenate([aw1, cw1], axis=1)                              # (S, 2H)
    b1 = jnp.concatenate([ab1, cb1], axis=1)                              # (1, 2H)
    zH = jnp.zeros((H, H), jnp.float32)
    w2 = jnp.concatenate(
        [jnp.concatenate([aw2, zH], axis=1),
         jnp.concatenate([zH, cw2], axis=1)], axis=0)                     # (2H, 2H)
    b2 = jnp.concatenate([ab2, cb2], axis=1)                              # (1, 2H)
    w3 = jnp.concatenate(
        [jnp.concatenate([aw3, jnp.zeros((H, 1), jnp.float32)], axis=1),
         jnp.concatenate([jnp.zeros((H, A), jnp.float32), cw3], axis=1)],
        axis=0)                                                           # (2H, A+1)
    b3 = jnp.concatenate([ab3, cb3], axis=1)                              # (1, A+1)

    # bf16 MXU operands on v6e/v7x if requested; biases / accumulation stay f32
    w1 = w1.astype(matmul_dtype)
    w2 = w2.astype(matmul_dtype)
    w3 = w3.astype(matmul_dtype)

    # ---- batch-constant distribution terms: wrapper-side scalars, not kernel work ----
    var = action_var.astype(jnp.float32)
    inv_var = (1.0 / var).reshape(1, A)
    log_det = jnp.sum(jnp.log(var))
    log2pi = math.log(2.0 * math.pi)
    logp_const = -0.5 * (log_det + A * log2pi)
    entropy = 0.5 * A * (1.0 + log2pi) + 0.5 * log_det                    # scalar

    # ---- batch tiling: pad rows to a sublane-friendly block ----
    tb = min(block_rows, _round_up(B, 8))
    b_pad = _round_up(B, tb)
    if b_pad != B:
        state = jnp.pad(state, ((0, b_pad - B), (0, 0)))
        action = jnp.pad(action, ((0, b_pad - B), (0, 0)))

    row_spec = lambda shape: pl.BlockSpec(shape, lambda i: (i, 0))
    const_spec = lambda arr: pl.BlockSpec(arr.shape, lambda i: (0, 0))    # stays resident

    slab = pl.pallas_call(
        functools.partial(_fused_eval_kernel, action_dim=A, matmul_dtype=matmul_dtype),
        out_shape=jax.ShapeDtypeStruct((b_pad, 128), jnp.float32),
        grid_spec=pltpu.PrefetchScalarGridSpec(
            num_scalar_prefetch=0,
            grid=(b_pad // tb,),
            in_specs=[
                row_spec((tb, S)),            # state   (streamed per batch block)
                row_spec((tb, A)),            # action  (streamed per batch block)
                const_spec(inv_var),          # (1, A)
                const_spec(w1), const_spec(b1),
                const_spec(w2), const_spec(b2),
                const_spec(w3), const_spec(b3),
            ],
            out_specs=pl.BlockSpec((tb, 128), lambda i: (i, 0)),
        ),
        compiler_params=pltpu.CompilerParams(
            dimension_semantics=("parallel",),   # shards across v7x's 2 TensorCores
        ),
    )(state, action, inv_var, w1, b1, w2, b2, w3, b3)

    logp = slab[:B, 0] + logp_const                                       # (B,)
    values = slab[:B, 1:2]                                                # (B, 1)
    dist_entropy = jnp.full((B,), entropy, jnp.float32)                   # (B,)
    return logp, values, dist_entropy


def _init_mlp(key, dims):
    """Deterministic Linear-layer params; weights stored as (in, out), biases as (1, out)."""
    params = []
    for i in range(len(dims) - 1):
        key, kw, kb = jax.random.split(key, 3)
        bound = 1.0 / math.sqrt(dims[i])
        w = jax.random.uniform(kw, (dims[i], dims[i + 1]), jnp.float32, -bound, bound)
        b = jax.random.uniform(kb, (1, dims[i + 1]), jnp.float32, -bound, bound)
        params += [w, b]
    return params


def _mlp_ref(x, params):
    w1, b1, w2, b2, w3, b3 = params
    h = jnp.tanh(x @ w1 + b1)
    h = jnp.tanh(h @ w2 + b2)
    return h @ w3 + b3


if __name__ == "__main__":
    key = jax.random.PRNGKey(0)
    B, S, H, A = 8, 16, 32, 4          # batch, state_dim, hidden, action_dim
    action_std_init = 0.6

    k_state, k_action, k_actor, k_critic = jax.random.split(key, 4)
    state = jax.random.normal(k_state, (B, S), jnp.float32)
    action = jax.random.normal(k_action, (B, A), jnp.float32)
    action_var = jnp.full((A,), action_std_init * action_std_init, jnp.float32)

    actor_params = _init_mlp(k_actor, (S, H, H, A))     # FullyConnectedNetwork (actor)
    critic_params = _init_mlp(k_critic, (S, H, H, 1))   # FullyConnectedNetwork (critic)

    logp, values, entropy = jax.block_until_ready(
        actor_critic_evaluate(state, action, action_var, actor_params, critic_params)
    )

    # pure-JAX reference check of the same math
    mean_ref = _mlp_ref(state, actor_params)
    val_ref = _mlp_ref(state, critic_params)
    diff = action - mean_ref
    log2pi = math.log(2.0 * math.pi)
    logp_ref = -0.5 * (jnp.sum(diff * diff / action_var, axis=-1)
                       + jnp.sum(jnp.log(action_var)) + A * log2pi)
    ent_ref = 0.5 * A * (1.0 + log2pi) + 0.5 * jnp.sum(jnp.log(action_var))

    assert logp.shape == (B,) and values.shape == (B, 1) and entropy.shape == (B,)
    assert jnp.allclose(logp, logp_ref, atol=1e-4, rtol=1e-4)
    assert jnp.allclose(values, val_ref, atol=1e-4, rtol=1e-4)
    assert jnp.allclose(entropy, jnp.full((B,), ent_ref), atol=1e-5)

    print("KERNEL_OK")
</pallas_src>

<mosaic_0001>
module attributes {stable_mosaic.version = 11 : i64} {
  func.func @_fused_eval_kernel(%arg0: i32, %arg1: memref<8x16xf32, #tpu.memory_space<vmem>>, %arg2: memref<8x4xf32, #tpu.memory_space<vmem>>, %arg3: memref<1x4xf32, #tpu.memory_space<vmem>>, %arg4: memref<16x64xf32, #tpu.memory_space<vmem>>, %arg5: memref<1x64xf32, #tpu.memory_space<vmem>>, %arg6: memref<64x64xf32, #tpu.memory_space<vmem>>, %arg7: memref<1x64xf32, #tpu.memory_space<vmem>>, %arg8: memref<64x5xf32, #tpu.memory_space<vmem>>, %arg9: memref<1x5xf32, #tpu.memory_space<vmem>>, %arg10: memref<8x128xf32, #tpu.memory_space<vmem>>) attributes {dimension_semantics = [#tpu.dimension_semantics<parallel>], iteration_bounds = array<i64: 1>, scalar_prefetch = 0 : i64, scratch_operands = 0 : i64, tpu.core_type = #tpu.core_type<tc>, window_params = [{transform_indices = @transform_0, window_bounds = array<i64: 8, 16>}, {transform_indices = @transform_1, window_bounds = array<i64: 8, 4>}, {pipeline_mode = #tpu.pipeline_mode<synchronous>, transform_indices = @transform_2, window_bounds = array<i64: 1, 4>}, {pipeline_mode = #tpu.pipeline_mode<synchronous>, transform_indices = @transform_3, window_bounds = array<i64: 16, 64>}, {pipeline_mode = #tpu.pipeline_mode<synchronous>, transform_indices = @transform_4, window_bounds = array<i64: 1, 64>}, {pipeline_mode = #tpu.pipeline_mode<synchronous>, transform_indices = @transform_5, window_bounds = array<i64: 64, 64>}, {pipeline_mode = #tpu.pipeline_mode<synchronous>, transform_indices = @transform_6, window_bounds = array<i64: 1, 64>}, {pipeline_mode = #tpu.pipeline_mode<synchronous>, transform_indices = @transform_7, window_bounds = array<i64: 64, 5>}, {pipeline_mode = #tpu.pipeline_mode<synchronous>, transform_indices = @transform_8, window_bounds = array<i64: 1, 5>}, {transform_indices = @transform_9, window_bounds = array<i64: 8, 128>}]} {
    %c0 = arith.constant 0 : index
    %c0_0 = arith.constant 0 : index
    %0 = vector.load %arg1[%c0, %c0_0] : memref<8x16xf32, #tpu.memory_space<vmem>>, vector<8x16xf32>
    %c0_1 = arith.constant 0 : index
    %c0_2 = arith.constant 0 : index
    %1 = vector.load %arg4[%c0_1, %c0_2] : memref<16x64xf32, #tpu.memory_space<vmem>>, vector<16x64xf32>
    %cst = arith.constant dense<0.000000e+00> : vector<8x64xf32>
    %2 = tpu.matmul %0, %1, %cst {dimension_numbers = #tpu.dot_dimension_numbers<[1], [0], [0], [1], [0, 0, 1, 1], [], []>} : vector<8x16xf32>, vector<16x64xf32>, vector<8x64xf32> -> vector<8x64xf32>
    %c0_3 = arith.constant 0 : index
    %c0_4 = arith.constant 0 : index
    %3 = vector.load %arg5[%c0_3, %c0_4] : memref<1x64xf32, #tpu.memory_space<vmem>>, vector<1x64xf32>
    %4 = vector.broadcast %3 : vector<1x64xf32> to vector<8x64xf32>
    %5 = arith.addf %2, %4 : vector<8x64xf32>
    %6 = math.tanh %5 : vector<8x64xf32>
    %c0_5 = arith.constant 0 : index
    %c0_6 = arith.constant 0 : index
    %7 = vector.load %arg6[%c0_5, %c0_6] : memref<64x64xf32, #tpu.memory_space<vmem>>, vector<64x64xf32>
    %cst_7 = arith.constant dense<0.000000e+00> : vector<8x64xf32>
    %8 = tpu.matmul %6, %7, %cst_7 {dimension_numbers = #tpu.dot_dimension_numbers<[1], [0], [0], [1], [0, 0, 1, 1], [], []>} : vector<8x64xf32>, vector<64x64xf32>, vector<8x64xf32> -> vector<8x64xf32>
    %c0_8 = arith.constant 0 : index
    %c0_9 = arith.constant 0 : index
    %9 = vector.load %arg7[%c0_8, %c0_9] : memref<1x64xf32, #tpu.memory_space<vmem>>, vector<1x64xf32>
    %10 = vector.broadcast %9 : vector<1x64xf32> to vector<8x64xf32>
    %11 = arith.addf %8, %10 : vector<8x64xf32>
    %12 = math.tanh %11 : vector<8x64xf32>
    %c0_10 = arith.constant 0 : index
    %c0_11 = arith.constant 0 : index
    %13 = vector.load %arg8[%c0_10, %c0_11] : memref<64x5xf32, #tpu.memory_space<vmem>>, vector<64x5xf32>
    %cst_12 = arith.constant dense<0.000000e+00> : vector<8x5xf32>
    %14 = tpu.matmul %12, %13, %cst_12 {dimension_numbers = #tpu.dot_dimension_numbers<[1], [0], [0], [1], [0, 0, 1, 1], [], []>} : vector<8x64xf32>, vector<64x5xf32>, vector<8x5xf32> -> vector<8x5xf32>
    %c0_13 = arith.constant 0 : index
    %c0_14 = arith.constant 0 : index
    %15 = vector.load %arg9[%c0_13, %c0_14] : memref<1x5xf32, #tpu.memory_space<vmem>>, vector<1x5xf32>
    %16 = vector.broadcast %15 : vector<1x5xf32> to vector<8x5xf32>
    %17 = arith.addf %14, %16 : vector<8x5xf32>
    %18 = vector.extract_strided_slice %17 {offsets = [0, 0], sizes = [8, 4], strides = [1, 1]} : vector<8x5xf32> to vector<8x4xf32>
    %19 = vector.extract_strided_slice %17 {offsets = [0, 4], sizes = [8, 1], strides = [1, 1]} : vector<8x5xf32> to vector<8x1xf32>
    %c0_15 = arith.constant 0 : index
    %c0_16 = arith.constant 0 : index
    %20 = vector.load %arg2[%c0_15, %c0_16] : memref<8x4xf32, #tpu.memory_space<vmem>>, vector<8x4xf32>
    %21 = arith.subf %20, %18 : vector<8x4xf32>
    %22 = arith.mulf %21, %21 : vector<8x4xf32>
    %c0_17 = arith.constant 0 : index
    %c0_18 = arith.constant 0 : index
    %23 = vector.load %arg3[%c0_17, %c0_18] : memref<1x4xf32, #tpu.memory_space<vmem>>, vector<1x4xf32>
    %24 = vector.broadcast %23 : vector<1x4xf32> to vector<8x4xf32>
    %25 = arith.mulf %22, %24 : vector<8x4xf32>
    %cst_19 = arith.constant dense<0.000000e+00> : vector<8xf32>
    %26 = vector.multi_reduction <add>, %25, %cst_19 [1] : vector<8x4xf32> to vector<8xf32>
    %27 = vector.shape_cast %26 : vector<8xf32> to vector<8x1xf32>
    %cst_20 = arith.constant -5.000000e-01 : f32
    %28 = vector.broadcast %cst_20 : f32 to vector<8x1xf32>
    %29 = arith.mulf %28, %27 : vector<8x1xf32>
    %30 = tpu.iota {dimensions = array<i32: 1>} : vector<8x128xi32>
    %c0_i32 = arith.constant 0 : i32
    %31 = vector.broadcast %c0_i32 : i32 to vector<8x128xi32>
    %32 = arith.cmpi eq, %30, %31 : vector<8x128xi32>
    %c1_i32 = arith.constant 1 : i32
    %33 = vector.broadcast %c1_i32 : i32 to vector<8x128xi32>
    %34 = arith.cmpi eq, %30, %33 : vector<8x128xi32>
    %cst_21 = arith.constant 0.000000e+00 : f32
    %35 = vector.shape_cast %19 : vector<8x1xf32> to vector<8x1xf32>
    %36 = vector.broadcast %35 : vector<8x1xf32> to vector<8x128xf32>
    %37 = vector.broadcast %cst_21 : f32 to vector<8x128xf32>
    %38 = arith.select %34, %36, %37 : vector<8x128xi1>, vector<8x128xf32>
    %39 = vector.shape_cast %29 : vector<8x1xf32> to vector<8x1xf32>
    %40 = vector.broadcast %39 : vector<8x1xf32> to vector<8x128xf32>
    %41 = arith.select %32, %40, %38 : vector<8x128xi1>, vector<8x128xf32>
    %c0_22 = arith.constant 0 : index
    %c0_23 = arith.constant 0 : index
    %42 = vector.load %arg10[%c0_22, %c0_23] : memref<8x128xf32, #tpu.memory_space<vmem>>, vector<8x128xf32>
    tpu.vector_store %arg10[%c0_22, %c0_23], %41 {strides = array<i32>} : memref<8x128xf32, #tpu.memory_space<vmem>>, vector<8x128xf32>,
    return
  }
  func.func @transform_0(%arg0: i32) -> (i32, i32) {
    %c0_i32 = arith.constant 0 : i32
    %c0_i32_0 = arith.constant 0 : i32
    return %arg0, %c0_i32 : i32, i32
  }
  func.func @transform_1(%arg0: i32) -> (i32, i32) {
    %c0_i32 = arith.constant 0 : i32
    %c0_i32_0 = arith.constant 0 : i32
    return %arg0, %c0_i32 : i32, i32
  }
  func.func @transform_2(%arg0: i32) -> (i32, i32) {
    %c0_i32 = arith.constant 0 : i32
    %c0_i32_0 = arith.constant 0 : i32
    %c0_i32_1 = arith.constant 0 : i32
    return %c0_i32, %c0_i32_0 : i32, i32
  }
  func.func @transform_3(%arg0: i32) -> (i32, i32) {
    %c0_i32 = arith.constant 0 : i32
    %c0_i32_0 = arith.constant 0 : i32
    %c0_i32_1 = arith.constant 0 : i32
    return %c0_i32, %c0_i32_0 : i32, i32
  }
  func.func @transform_4(%arg0: i32) -> (i32, i32) {
    %c0_i32 = arith.constant 0 : i32
    %c0_i32_0 = arith.constant 0 : i32
    %c0_i32_1 = arith.constant 0 : i32
    return %c0_i32, %c0_i32_0 : i32, i32
  }
  func.func @transform_5(%arg0: i32) -> (i32, i32) {
    %c0_i32 = arith.constant 0 : i32
    %c0_i32_0 = arith.constant 0 : i32
    %c0_i32_1 = arith.constant 0 : i32
    return %c0_i32, %c0_i32_0 : i32, i32
  }
  func.func @transform_6(%arg0: i32) -> (i32, i32) {
    %c0_i32 = arith.constant 0 : i32
    %c0_i32_0 = arith.constant 0 : i32
    %c0_i32_1 = arith.constant 0 : i32
    return %c0_i32, %c0_i32_0 : i32, i32
  }
  func.func @transform_7(%arg0: i32) -> (i32, i32) {
    %c0_i32 = arith.constant 0 : i32
    %c0_i32_0 = arith.constant 0 : i32
    %c0_i32_1 = arith.constant 0 : i32
    return %c0_i32, %c0_i32_0 : i32, i32
  }
  func.func @transform_8(%arg0: i32) -> (i32, i32) {
    %c0_i32 = arith.constant 0 : i32
    %c0_i32_0 = arith.constant 0 : i32
    %c0_i32_1 = arith.constant 0 : i32
    return %c0_i32, %c0_i32_0 : i32, i32
  }
  func.func @transform_9(%arg0: i32) -> (i32, i32) {
    %c0_i32 = arith.constant 0 : i32
    %c0_i32_0 = arith.constant 0 : i32
    return %arg0, %c0_i32 : i32, i32
  }
}

</mosaic_0001>

<llo_original>
// kernel: tpu_custom_call.1
$region0: #{tpu_custom_call.1}
  #allocation0 [shape = 'u32[]', space=smem, size = 0x4, offset = 0x4, fixed_abs, tag = 'smem constant byte address 0x4 - core index']
  #allocation1 [shape = 'u32[144,128]{1,0:T(1,128)}', space=vmem, size = 0x12000, scoped, tag = 'internal scratch']
  %s0 = inlined_call_operand.vmem [shape: f32[8,16], index: 0, kind: input, shape index: {}]
  %s1 = inlined_call_operand.vmem [shape: f32[8,4], index: 1, kind: input, shape index: {}]
  %s2 = inlined_call_operand.vmem [shape: f32[1,4], index: 2, kind: input, shape index: {}]
  %s3 = inlined_call_operand.vmem [shape: f32[16,64], index: 3, kind: input, shape index: {}]
  %s4 = inlined_call_operand.vmem [shape: f32[1,64], index: 4, kind: input, shape index: {}]
  %s5 = inlined_call_operand.vmem [shape: f32[64,64], index: 5, kind: input, shape index: {}]
  %s6 = inlined_call_operand.vmem [shape: f32[1,64], index: 6, kind: input, shape index: {}]
  %s7 = inlined_call_operand.vmem [shape: f32[64,5], index: 7, kind: input, shape index: {}]
  %s8 = inlined_call_operand.vmem [shape: f32[1,5], index: 8, kind: input, shape index: {}]
  %s9 = inlined_call_operand.hbm [shape: f32[8,128], index: 9, kind: output, shape index: {}]
  %s10 = sld [smem:[#allocation0]]
  $region46: #{tpu_custom_call.1} parent=0
    _
  %s12 = ssub.s32 1, %s10
  %s13 = scalar_select 0, %s12, %s10
  $region1: #{tpu_custom_call.1} parent=0
    #allocation2 [shape = 'u8[4096]{0}', space=vmem, size = 0x1000, scoped, tag = 'output window, operand 0, single buffered']
    #allocation3 [shape = 's32[1]{0}', space=sflag, size = 0x4, scoped, tag = 'scoped memory for tpu_custom_call.1']
    %14 = vsyncpa [#allocation3], 0
    // Predicated region
    $region2: #{tpu_custom_call.1} parent=1 // pred_check
      _
    $region3: #{tpu_custom_call.1} parent=1 // pred_check_branch
      %16 = sbr.rel (0) target = $region5
    $region4: #{tpu_custom_call.1} parent=1 // pred_region
      _
    $region5: #{tpu_custom_call.1} parent=1 // pred_fallthru
      _
    // Predicated region
    $region6: #{tpu_custom_call.1} parent=1 // pred_check
      _
    $region7: #{tpu_custom_call.1} parent=1 // pred_check_branch
      %18 = sbr.rel (0) target = $region9
    $region8: #{tpu_custom_call.1} parent=1 // pred_region
      _
    $region9: #{tpu_custom_call.1} parent=1 // pred_fallthru
      _
    // Predicated region
    $region10: #{tpu_custom_call.1} parent=1 // pred_check
      _
    $region11: #{tpu_custom_call.1} parent=1 // pred_check_branch
      %20 = sbr.rel (0) target = $region13
    $region12: #{tpu_custom_call.1} parent=1 // pred_region
      _
    $region13: #{tpu_custom_call.1} parent=1 // pred_fallthru
      _
    // Predicated region
    $region14: #{tpu_custom_call.1} parent=1 // pred_check
      _
    $region15: #{tpu_custom_call.1} parent=1 // pred_check_branch
      %22 = sbr.rel (0) target = $region17
    $region16: #{tpu_custom_call.1} parent=1 // pred_region
      _
    $region17: #{tpu_custom_call.1} parent=1 // pred_fallthru
      _
    // Predicated region
    $region18: #{tpu_custom_call.1} parent=1 // pred_check
      _
    $region19: #{tpu_custom_call.1} parent=1 // pred_check_branch
      %24 = sbr.rel (0) target = $region21
    $region20: #{tpu_custom_call.1} parent=1 // pred_region
      _
    $region21: #{tpu_custom_call.1} parent=1 // pred_fallthru
      _
    // Predicated region
    $region22: #{tpu_custom_call.1} parent=1 // pred_check
      _
    $region23: #{tpu_custom_call.1} parent=1 // pred_check_branch
      %26 = sbr.rel (0) target = $region25
    $region24: #{tpu_custom_call.1} parent=1 // pred_region
      _
    $region25: #{tpu_custom_call.1} parent=1 // pred_fallthru
      _
    // Predicated region
    $region26: #{tpu_custom_call.1} parent=1 // pred_check
      _
    $region27: #{tpu_custom_call.1} parent=1 // pred_check_branch
      %28 = sbr.rel (0) target = $region29
    $region28: #{tpu_custom_call.1} parent=1 // pred_region
      _
    $region29: #{tpu_custom_call.1} parent=1 // pred_fallthru
      _
    // Predicated region
    $region30: #{tpu_custom_call.1} parent=1 // pred_check
      _
    $region31: #{tpu_custom_call.1} parent=1 // pred_check_branch
      %30 = sbr.rel (0) target = $region33
    $region32: #{tpu_custom_call.1} parent=1 // pred_region
      _
    $region33: #{tpu_custom_call.1} parent=1 // pred_fallthru
      _
    // Predicated region
    $region34: #{tpu_custom_call.1} parent=1 // pred_check
      _
    $region35: #{tpu_custom_call.1} parent=1 // pred_check_branch
      %32 = sbr.rel (0) target = $region37
    $region36: #{tpu_custom_call.1} parent=1 // pred_region
      _
    $region37: #{tpu_custom_call.1} parent=1 // pred_fallthru
      _
    %v33 = vld [vmem:[%s0] sm:$0xff]
    %v34 = vld [vmem:[%s3] sm:$0xff]
    %v35 = vld [vmem:[%s3 + $0x8] sm:$0xff]
    %v36 = vld [vmem:[%s4] sm:$0x1]
    %v38 = vlaneseq
    %v39 = vshrl.u32 %v38, 7
    %v40 = vsub.s32 0, %v39
    %v41 = vrot.slane %v36, %v40
    %vm43 = vcmask 130048
    %v45 = vsel %vm43, %v33, 0
    %47 = vmatprep.subr.mxu0 0.0
    %48 = vmatpush1.msra.mxu0 %v34
    %49 = vmatprep.subr.mxu0 0.0
    %50 = vmatpush1.msra.mxu0 %v35
    %51 = vmatprep.subr.mxu0 0.0
    %52 = vmatpush1.msra.mxu0 0.0
    %53 = vmatprep.subr.mxu0 0.0
    %54 = vmatpush1.msra.mxu0 0.0
    %55 = vmatprep.subr.mxu0 0.0
    %56 = vmatpush1.msra.mxu0 0.0
    %57 = vmatprep.subr.mxu0 0.0
    %58 = vmatpush1.msra.mxu0 0.0
    %59 = vmatprep.subr.mxu0 0.0
    %60 = vmatpush1.msra.mxu0 0.0
    %61 = vmatprep.subr.mxu0 0.0
    %62 = vmatpush1.msra.mxu0 0.0
    %63 = vmatprep.subr.mxu0 0.0
    %64 = vmatpush1.msra.mxu0 0.0
    %65 = vmatprep.subr.mxu0 0.0
    %66 = vmatpush1.msra.mxu0 0.0
    %67 = vmatprep.subr.mxu0 0.0
    %68 = vmatpush1.msra.mxu0 0.0
    %69 = vmatprep.subr.mxu0 0.0
    %70 = vmatpush1.msra.mxu0 0.0
    %71 = vmatprep.subr.mxu0 0.0
    %72 = vmatpush1.msra.mxu0 0.0
    %73 = vmatprep.subr.mxu0 0.0
    %74 = vmatpush1.msra.mxu0 0.0
    %75 = vmatprep.subr.mxu0 0.0
    %76 = vmatpush1.msra.mxu0 0.0
    %77 = vmatprep.subr.mxu0 0.0
    %78 = vmatpush1.msra.mxu0 0.0
    %79 = vmatprep.subr.mxu0 0.0
    %80 = vmatpush1.msra.mxu0 0.0
    %81 = vmatprep.subr.mxu0 0.0
    %82 = vmatpush1.msra.mxu0 0.0
    %83 = vmatprep.subr.mxu0 0.0
    %84 = vmatpush1.msra.mxu0 0.0
    %85 = vmatprep.subr.mxu0 0.0
    %86 = vmatpush1.msra.mxu0 0.0
    %87 = vmatprep.subr.mxu0 0.0
    %88 = vmatpush1.msra.mxu0 0.0
    %89 = vmatprep.subr.mxu0 0.0
    %90 = vmatpush1.msra.mxu0 0.0
    %91 = vmatprep.subr.mxu0 0.0
    %92 = vmatpush1.msra.mxu0 0.0
    %93 = vmatprep.subr.mxu0 0.0
    %94 = vmatpush1.msra.mxu0 0.0
    %95 = vmatprep.subr.mxu0 0.0
    %96 = vmatpush1.msra.mxu0 0.0
    %97 = vmatprep.subr.mxu0 0.0
    %98 = vmatpush1.msra.mxu0 0.0
    %99 = vmatprep.subr.mxu0 0.0
    %100 = vmatpush1.msra.mxu0 0.0
    %101 = vmatprep.subr.mxu0 0.0
    %102 = vmatpush1.msra.mxu0 0.0
    %103 = vmatprep.subr.mxu0 0.0
    %104 = vmatpush1.msra.mxu0 0.0
    %105 = vmatprep.subr.mxu0 0.0
    %106 = vmatpush1.msra.mxu0 0.0
    %107 = vmatprep.subr.mxu0 0.0
    %108 = vmatpush1.msra.mxu0 0.0
    %109 = vmatprep.subr.mxu0 0.0
    %110 = vmatpush1.msra.mxu0 0.0
    %111 = vmatprep.mubr.f32.mxu0 0.0
    %112 = vmatmul.mubr.f32.gmra.mrb[0].mxu0 %v45
    %v113 = vpop.f32.mrb[0].mxu0
    %v114 = vadd.f32 %v41, %v113
    %v115 = vpop.f32.mrb[0].mxu0
    %116 = vdwg.mxu0
    %v117 = vtanh.pop %v114
    %v118 = vld [vmem:[%s5] sm:$0xff]
    %v119 = vld [vmem:[%s5 + $0x8] sm:$0xff]
    %v120 = vld [vmem:[%s5 + $0x10] sm:$0xff]
    %v121 = vld [vmem:[%s5 + $0x18] sm:$0xff]
    %v122 = vld [vmem:[%s5 + $0x20] sm:$0xff]
    %v123 = vld [vmem:[%s5 + $0x28] sm:$0xff]
    %v124 = vld [vmem:[%s5 + $0x30] sm:$0xff]
    %v125 = vld [vmem:[%s5 + $0x38] sm:$0xff]
    %v126 = vld [vmem:[%s6] sm:$0x1]
    %v128 = vlaneseq
    %v129 = vshrl.u32 %v128, 7
    %v130 = vsub.s32 0, %v129
    %v131 = vrot.slane %v126, %v130
    %vm133 = vcmask 523264
    %v135 = vsel %vm133, %v117, 0
    %137 = vmatprep.subr.mxu0 0.0
    %138 = vmatpush1.msra.mxu0 %v118
    %139 = vmatprep.subr.mxu0 0.0
    %140 = vmatpush1.msra.mxu0 %v119
    %141 = vmatprep.subr.mxu0 0.0
    %142 = vmatpush1.msra.mxu0 %v120
    %143 = vmatprep.subr.mxu0 0.0
    %144 = vmatpush1.msra.mxu0 %v121
    %145 = vmatprep.subr.mxu0 0.0
    %146 = vmatpush1.msra.mxu0 %v122
    %147 = vmatprep.subr.mxu0 0.0
    %148 = vmatpush1.msra.mxu0 %v123
    %149 = vmatprep.subr.mxu0 0.0
    %150 = vmatpush1.msra.mxu0 %v124
    %151 = vmatprep.subr.mxu0 0.0
    %152 = vmatpush1.msra.mxu0 %v125
    %153 = vmatprep.subr.mxu0 0.0
    %154 = vmatpush1.msra.mxu0 0.0
    %155 = vmatprep.subr.mxu0 0.0
    %156 = vmatpush1.msra.mxu0 0.0
    %157 = vmatprep.subr.mxu0 0.0
    %158 = vmatpush1.msra.mxu0 0.0
    %159 = vmatprep.subr.mxu0 0.0
    %160 = vmatpush1.msra.mxu0 0.0
    %161 = vmatprep.subr.mxu0 0.0
    %162 = vmatpush1.msra.mxu0 0.0
    %163 = vmatprep.subr.mxu0 0.0
    %164 = vmatpush1.msra.mxu0 0.0
    %165 = vmatprep.subr.mxu0 0.0
    %166 = vmatpush1.msra.mxu0 0.0
    %167 = vmatprep.subr.mxu0 0.0
    %168 = vmatpush1.msra.mxu0 0.0
    %169 = vmatprep.subr.mxu0 0.0
    %170 = vmatpush1.msra.mxu0 0.0
    %171 = vmatprep.subr.mxu0 0.0
    %172 = vmatpush1.msra.mxu0 0.0
    %173 = vmatprep.subr.mxu0 0.0
    %174 = vmatpush1.msra.mxu0 0.0
    %175 = vmatprep.subr.mxu0 0.0
    %176 = vmatpush1.msra.mxu0 0.0
    %177 = vmatprep.subr.mxu0 0.0
    %178 = vmatpush1.msra.mxu0 0.0
    %179 = vmatprep.subr.mxu0 0.0
    %180 = vmatpush1.msra.mxu0 0.0
    %181 = vmatprep.subr.mxu0 0.0
    %182 = vmatpush1.msra.mxu0 0.0
    %183 = vmatprep.subr.mxu0 0.0
    %184 = vmatpush1.msra.mxu0 0.0
    %185 = vmatprep.subr.mxu0 0.0
    %186 = vmatpush1.msra.mxu0 0.0
    %187 = vmatprep.subr.mxu0 0.0
    %188 = vmatpush1.msra.mxu0 0.0
    %189 = vmatprep.subr.mxu0 0.0
    %190 = vmatpush1.msra.mxu0 0.0
    %191 = vmatprep.subr.mxu0 0.0
    %192 = vmatpush1.msra.mxu0 0.0
    %193 = vmatprep.subr.mxu0 0.0
    %194 = vmatpush1.msra.mxu0 0.0
    %195 = vmatprep.subr.mxu0 0.0
    %196 = vmatpush1.msra.mxu0 0.0
    %197 = vmatprep.subr.mxu0 0.0
    %198 = vmatpush1.msra.mxu0 0.0
    %199 = vmatprep.subr.mxu0 0.0
    %200 = vmatpush1.msra.mxu0 0.0
    %201 = vmatprep.mubr.f32.mxu0 0.0
    %202 = vmatmul.mubr.f32.gmra.mrb[0].mxu0 %v135
    %v203 = vpop.f32.mrb[0].mxu0
    %v204 = vadd.f32 %v131, %v203
    %v205 = vpop.f32.mrb[0].mxu0
    %206 = vdwg.mxu0
    %v207 = vtanh.pop %v204
    %v208 = vld [vmem:[%s7] sm:$0xff]
    %v209 = vld [vmem:[%s7 + $0x8] sm:$0xff]
    %v210 = vld [vmem:[%s7 + $0x10] sm:$0xff]
    %v211 = vld [vmem:[%s7 + $0x18] sm:$0xff]
    %v212 = vld [vmem:[%s7 + $0x20] sm:$0xff]
    %v213 = vld [vmem:[%s7 + $0x28] sm:$0xff]
    %v214 = vld [vmem:[%s7 + $0x30] sm:$0xff]
    %v215 = vld [vmem:[%s7 + $0x38] sm:$0xff]
    %v216 = vld [vmem:[%s8] sm:$0x1]
    %v218 = vlaneseq
    %v219 = vshrl.u32 %v218, 7
    %v220 = vsub.s32 0, %v219
    %v221 = vrot.slane %v216, %v220
    %v224 = vsel %vm133, %v207, 0
    %226 = vmatprep.subr.mxu0 0.0
    %227 = vmatpush1.msra.mxu0 %v208
    %228 = vmatprep.subr.mxu0 0.0
    %229 = vmatpush1.msra.mxu0 %v209
    %230 = vmatprep.subr.mxu0 0.0
    %231 = vmatpush1.msra.mxu0 %v210
    %232 = vmatprep.subr.mxu0 0.0
    %233 = vmatpush1.msra.mxu0 %v211
    %234 = vmatprep.subr.mxu0 0.0
    %235 = vmatpush1.msra.mxu0 %v212
    %236 = vmatprep.subr.mxu0 0.0
    %237 = vmatpush1.msra.mxu0 %v213
    %238 = vmatprep.subr.mxu0 0.0
    %239 = vmatpush1.msra.mxu0 %v214
    %240 = vmatprep.subr.mxu0 0.0
    %241 = vmatpush1.msra.mxu0 %v215
    %242 = vmatprep.subr.mxu0 0.0
    %243 = vmatpush1.msra.mxu0 0.0
    %244 = vmatprep.subr.mxu0 0.0
    %245 = vmatpush1.msra.mxu0 0.0
    %246 = vmatprep.subr.mxu0 0.0
    %247 = vmatpush1.msra.mxu0 0.0
    %248 = vmatprep.subr.mxu0 0.0
    %249 = vmatpush1.msra.mxu0 0.0
    %250 = vmatprep.subr.mxu0 0.0
    %251 = vmatpush1.msra.mxu0 0.0
    %252 = vmatprep.subr.mxu0 0.0
    %253 = vmatpush1.msra.mxu0 0.0
    %254 = vmatprep.subr.mxu0 0.0
    %255 = vmatpush1.msra.mxu0 0.0
    %256 = vmatprep.subr.mxu0 0.0
    %257 = vmatpush1.msra.mxu0 0.0
    %258 = vmatprep.subr.mxu0 0.0
    %259 = vmatpush1.msra.mxu0 0.0
    %260 = vmatprep.subr.mxu0 0.0
    %261 = vmatpush1.msra.mxu0 0.0
    %262 = vmatprep.subr.mxu0 0.0
    %263 = vmatpush1.msra.mxu0 0.0
    %264 = vmatprep.subr.mxu0 0.0
    %265 = vmatpush1.msra.mxu0 0.0
    %266 = vmatprep.subr.mxu0 0.0
    %267 = vmatpush1.msra.mxu0 0.0
    %268 = vmatprep.subr.mxu0 0.0
    %269 = vmatpush1.msra.mxu0 0.0
    %270 = vmatprep.subr.mxu0 0.0
    %271 = vmatpush1.msra.mxu0 0.0
    %272 = vmatprep.subr.mxu0 0.0
    %273 = vmatpush1.msra.mxu0 0.0
    %274 = vmatprep.subr.mxu0 0.0
    %275 = vmatpush1.msra.mxu0 0.0
    %276 = vmatprep.subr.mxu0 0.0
    %277 = vmatpush1.msra.mxu0 0.0
    %278 = vmatprep.subr.mxu0 0.0
    %279 = vmatpush1.msra.mxu0 0.0
    %280 = vmatprep.subr.mxu0 0.0
    %281 = vmatpush1.msra.mxu0 0.0
    %282 = vmatprep.subr.mxu0 0.0
    %283 = vmatpush1.msra.mxu0 0.0
    %284 = vmatprep.subr.mxu0 0.0
    %285 = vmatpush1.msra.mxu0 0.0
    %286 = vmatprep.subr.mxu0 0.0
    %287 = vmatpush1.msra.mxu0 0.0
    %288 = vmatprep.subr.mxu0 0.0
    %289 = vmatpush1.msra.mxu0 0.0
    %290 = vmatprep.mubr.f32.mxu0 0.0
    %291 = vmatmul.mubr.f32.gmra.mrb[0].mxu0 %v224
    %v292 = vpop.f32.mrb[0].mxu0
    %v293 = vadd.f32 %v221, %v292
    %v294 = vpop.f32.mrb[0].mxu0
    %295 = vdwg.mxu0
    %v296 = vld [vmem:[%s1] sm:$0xff]
    %v297 = vsub.f32 %v296, %v293
    %v298 = vmul.f32 %v297, %v297
    %v299 = vld [vmem:[%s2] sm:$0x1]
    %v301 = vlaneseq
    %v302 = vshrl.u32 %v301, 7
    %v303 = vsub.s32 0, %v302
    %v304 = vrot.slane %v299, %v303
    %v306 = vmul.f32 %v298, %v304
    %vm307 = vcmask 31744
    %v308 = vsel %vm307, %v306, 0.0
    %309 = vadd.xlane.f32.xlu0 %v308
    %v310 = vpop.xlane.xlu0 %309
    %v311 = vmul.f32 %v310, -0.5
    %v312 = vlaneseq
    %v313 = vand.u32 %v312, 127
    %vm314 = vcmp.eq.s32.totalorder %v313, 0
    %vm315 = vcmp.eq.s32.totalorder %v313, 1
    %317 = vset.pattern.permute.xlu0 4
    %318 = vperm.xlu0 %317, %v293
    %v319 = vpop.permute.xlu0 %318
    %v321 = vsel %vm315, %v319, 0.0
    %v322 = vsel %vm314, %v311, %v321
    %323 = vst [vmem:[#allocation2] sm:$0xff] %v322
    // Predicated region
    $region38: #{tpu_custom_call.1} parent=1 // pred_check
      _
    $region39: #{tpu_custom_call.1} parent=1 // pred_check_branch
      %325 = sbr.rel (0) target = $region41
    $region40: #{tpu_custom_call.1} parent=1 // pred_region
      %s327 = ssub.s32 128, 128
      %328 = vsyncadd [#allocation3], %s327
      %s330 = sshll.u32 [#allocation2], 4
      %s331 = int_to_ptr.vmem [resolvable:$true] %s330
      %333 = dma.vmem_to_hbm [thread:$0]  %s331, 128, %s9, [#allocation3]
    $region41: #{tpu_custom_call.1} parent=1 // pred_fallthru
      _
    // Predicated region
    $region42: #{tpu_custom_call.1} parent=1 // pred_check
      _
    $region43: #{tpu_custom_call.1} parent=1 // pred_check_branch
      %335 = sbr.rel (0) target = $region45
    $region44: #{tpu_custom_call.1} parent=1 // pred_region
      %336 = dma.done [#allocation3], 128
    $region45: #{tpu_custom_call.1} parent=1 // pred_fallthru
      _
    %337 = vsyncpa [#allocation3], 1

</llo_original>
